<compile_context>
chip_gen: v6e
topology: v6e:2x2x1
jax: 0.10.0
libtpu: 0.0.40
codegen_flags: <defaults>
</compile_context>

<pallas_src>
import functools

import jax
import jax.numpy as jnp
from jax import lax
from jax.experimental import pallas as pl
from jax.experimental.pallas import tpu as pltpu


def _softplus(x):
    # numerically-stable softplus, used identically in wrapper and reference
    return jnp.maximum(x, 0.0) + jnp.log(1.0 + jnp.exp(-jnp.abs(x)))


def rat_reader_kernel(x_ref, nrm_ref, w_ref, g_ref, gamma_ref, beta_ref, o_ref, *, eps):
    # x_ref/nrm_ref : (tm2, 2*H*C)   -- two tokens per row, lane-dense
    # w_ref         : (2*H*C, 2*N*H) -- block-diag softplus(q) contraction weight
    # g_ref         : (2*N*H, 2*N*H) -- group-averaging matrix (GroupNorm reductions)
    # gamma_ref/beta_ref : (1, 2*N*H)
    # o_ref         : (tm2, 2*N*H)
    f32 = jnp.float32
    x = x_ref[...].astype(f32)
    nrm = nrm_ref[...].astype(f32)
    w = w_ref[...]

    # contraction over C on the MXU; result is already n-major per token
    y = jnp.dot(x, w, preferred_element_type=f32)
    d = jnp.dot(nrm, w, preferred_element_type=f32)
    y = y / (d + 1.0)

    # GroupNorm: per-row, per-group (H consecutive lanes) mean/var via MXU matmul
    gmat = g_ref[...]
    mean = jnp.dot(y, gmat, preferred_element_type=f32)        # group mean, broadcast
    yc = y - mean
    var = jnp.dot(yc * yc, gmat, preferred_element_type=f32)   # biased variance, broadcast
    yhat = yc * lax.rsqrt(var + eps)

    o_ref[...] = (yhat * gamma_ref[...] + beta_ref[...]).astype(o_ref.dtype)


def rat_reader_forward(x, normalizer, q, gamma, beta, *, eps=1e-5, tm=2048):
    """x, normalizer: (bs, l, H, C); q: (H, C, N); gamma, beta: (N*H,).

    tm = tokens per grid step (paired into tm//2 lane-dense rows internally).
    """
    bs, l, H, C = x.shape
    N = q.shape[-1]
    M = bs * l
    HC = H * C
    NH = N * H
    f32 = jnp.float32

    # ---- token pairing / tiling (lane-dense output rows of width 2*N*H) ----
    M2 = pl.cdiv(M, 2)                      # number of token pairs
    tm2 = max(8, tm // 2)
    if M2 <= tm2:
        tm2 = M2                            # single full-array tile
        M2p = M2
    else:
        tm2 = (tm2 // 8) * 8                # keep sublane alignment
        M2p = pl.cdiv(M2, tm2) * tm2
    Mp = 2 * M2p

    # ---- input prep: contiguous reshapes only (no transposes) ----
    x_flat = x.reshape(M, HC)
    n_flat = normalizer.reshape(M, HC)
    if Mp != M:
        pad = ((0, Mp - M), (0, 0))
        x_flat = jnp.pad(x_flat, pad)       # zero rows -> finite, discarded below
        n_flat = jnp.pad(n_flat, pad)
    x2 = x_flat.reshape(M2p, 2 * HC)
    n2 = n_flat.reshape(M2p, 2 * HC)

    # ---- constant weights (softplus hoisted out of the kernel) ----
    qp = _softplus(q.astype(f32))                                   # (H, C, N)
    # Wq[h*C + c, n*H + h'] = softplus(q)[h, c, n] * (h == h')
    wq = jnp.einsum("hcn,hk->hcnk", qp, jnp.eye(H, dtype=f32)).reshape(HC, NH)
    w2 = jnp.kron(jnp.eye(2, dtype=f32), wq)                        # (2*HC, 2*NH)
    # group-averaging matrix: groups of H consecutive output lanes, 2*N groups/row
    gmat = jnp.kron(jnp.eye(2 * N, dtype=f32),
                    jnp.full((H, H), 1.0 / H, dtype=f32))           # (2*NH, 2*NH)
    gamma2 = jnp.tile(gamma.astype(f32).reshape(1, NH), (1, 2))     # (1, 2*NH)
    beta2 = jnp.tile(beta.astype(f32).reshape(1, NH), (1, 2))       # (1, 2*NH)

    kernel = functools.partial(rat_reader_kernel, eps=eps)
    out = pl.pallas_call(
        kernel,
        out_shape=jax.ShapeDtypeStruct((M2p, 2 * NH), x.dtype),
        grid_spec=pltpu.PrefetchScalarGridSpec(
            num_scalar_prefetch=0,
            grid=(M2p // tm2,),
            in_specs=[
                pl.BlockSpec((tm2, 2 * HC), lambda i: (i, 0)),
                pl.BlockSpec((tm2, 2 * HC), lambda i: (i, 0)),
                pl.BlockSpec((2 * HC, 2 * NH), lambda i: (0, 0)),    # resident constant
                pl.BlockSpec((2 * NH, 2 * NH), lambda i: (0, 0)),    # resident constant
                pl.BlockSpec((1, 2 * NH), lambda i: (0, 0)),
                pl.BlockSpec((1, 2 * NH), lambda i: (0, 0)),
            ],
            out_specs=pl.BlockSpec((tm2, 2 * NH), lambda i: (i, 0)),
        ),
        compiler_params=pltpu.CompilerParams(
            dimension_semantics=("parallel",),     # independent steps -> v7x megacore
            vmem_limit_bytes=32 * 1024 * 1024,
        ),
    )(x2, n2, w2, gmat, gamma2, beta2)

    return out.reshape(Mp, NH)[:M].reshape(bs, l, NH)


def rat_reader_ref(x, normalizer, q, gamma, beta, eps=1e-5):
    """Pure-JAX mirror of the PyTorch forward, for validation."""
    qp = _softplus(q)                                            # (H, C, N)
    y = jnp.sum(x[..., None] * qp[None, None], axis=-2)          # (bs, l, H, N)
    d = jnp.sum(normalizer[..., None] * qp[None, None], axis=-2)
    y = y / (d + 1.0)
    bs, l, H, N = y.shape
    yp = jnp.transpose(y, (0, 1, 3, 2)).reshape(bs * l, N, H)    # groups of H channels
    mean = jnp.mean(yp, axis=-1, keepdims=True)
    var = jnp.mean((yp - mean) ** 2, axis=-1, keepdims=True)
    yn = (yp - mean) / jnp.sqrt(var + eps)
    yn = yn * gamma.reshape(N, H)[None] + beta.reshape(N, H)[None]
    return yn.reshape(bs, l, N * H)


def _make_inputs(key, bs, l, H, C, N):
    kx, kn, kq, kg, kb = jax.random.split(key, 5)
    x = jax.random.normal(kx, (bs, l, H, C), dtype=jnp.float32)
    normalizer = jnp.abs(jax.random.normal(kn, (bs, l, H, C), dtype=jnp.float32))
    q = jax.random.normal(kq, (H, C, N), dtype=jnp.float32) / jnp.sqrt(float(C))
    gamma = 1.0 + 0.1 * jax.random.normal(kg, (N * H,), dtype=jnp.float32)
    beta = 0.1 * jax.random.normal(kb, (N * H,), dtype=jnp.float32)
    return x, normalizer, q, gamma, beta


if __name__ == "__main__":
    # config: hidden_size=32, residual_channels=4, num_inputs=2, layer_norm_eps=1e-5
    H, C, N = 32, 4, 2
    eps = 1e-5
    key = jax.random.PRNGKey(0)
    k1, k2 = jax.random.split(key)

    # tolerance leaves headroom for MXU f32 rounding in the matmul formulation
    atol = rtol = 1e-3

    # Case A: small shapes, single tile, no padding.
    x, normalizer, q, gamma, beta = _make_inputs(k1, 2, 8, H, C, N)
    out = jax.block_until_ready(rat_reader_forward(x, normalizer, q, gamma, beta, eps=eps))
    ref = rat_reader_ref(x, normalizer, q, gamma, beta, eps=eps)
    assert out.shape == (2, 8, N * H)
    assert jnp.allclose(out, ref, atol=atol, rtol=rtol), float(jnp.max(jnp.abs(out - ref)))

    # Case B: odd token count, multi-tile grid, exercises the zero-padding path.
    x, normalizer, q, gamma, beta = _make_inputs(k2, 1, 301, H, C, N)
    out = jax.block_until_ready(
        rat_reader_forward(x, normalizer, q, gamma, beta, eps=eps, tm=256))
    ref = rat_reader_ref(x, normalizer, q, gamma, beta, eps=eps)
    assert out.shape == (1, 301, N * H)
    assert jnp.allclose(out, ref, atol=atol, rtol=rtol), float(jnp.max(jnp.abs(out - ref)))

    print("KERNEL_OK")
</pallas_src>

<mosaic_0001>
module attributes {stable_mosaic.version = 11 : i64} {
  func.func @rat_reader_kernel(%arg0: i32, %arg1: memref<8x256xf32, #tpu.memory_space<vmem>>, %arg2: memref<8x256xf32, #tpu.memory_space<vmem>>, %arg3: memref<256x128xf32, #tpu.memory_space<vmem>>, %arg4: memref<128x128xf32, #tpu.memory_space<vmem>>, %arg5: memref<1x128xf32, #tpu.memory_space<vmem>>, %arg6: memref<1x128xf32, #tpu.memory_space<vmem>>, %arg7: memref<8x128xf32, #tpu.memory_space<vmem>>) attributes {dimension_semantics = [#tpu.dimension_semantics<parallel>], iteration_bounds = array<i64: 1>, scalar_prefetch = 0 : i64, scratch_operands = 0 : i64, tpu.core_type = #tpu.core_type<tc>, window_params = [{transform_indices = @transform_0, window_bounds = array<i64: 8, 256>}, {transform_indices = @transform_1, window_bounds = array<i64: 8, 256>}, {pipeline_mode = #tpu.pipeline_mode<synchronous>, transform_indices = @transform_2, window_bounds = array<i64: 256, 128>}, {pipeline_mode = #tpu.pipeline_mode<synchronous>, transform_indices = @transform_3, window_bounds = array<i64: 128, 128>}, {pipeline_mode = #tpu.pipeline_mode<synchronous>, transform_indices = @transform_4, window_bounds = array<i64: 1, 128>}, {pipeline_mode = #tpu.pipeline_mode<synchronous>, transform_indices = @transform_5, window_bounds = array<i64: 1, 128>}, {transform_indices = @transform_6, window_bounds = array<i64: 8, 128>}]} {
    %c0 = arith.constant 0 : index
    %c0_0 = arith.constant 0 : index
    %0 = vector.load %arg1[%c0, %c0_0] : memref<8x256xf32, #tpu.memory_space<vmem>>, vector<8x256xf32>
    %c0_1 = arith.constant 0 : index
    %c0_2 = arith.constant 0 : index
    %1 = vector.load %arg2[%c0_1, %c0_2] : memref<8x256xf32, #tpu.memory_space<vmem>>, vector<8x256xf32>
    %c0_3 = arith.constant 0 : index
    %c0_4 = arith.constant 0 : index
    %2 = vector.load %arg3[%c0_3, %c0_4] : memref<256x128xf32, #tpu.memory_space<vmem>>, vector<256x128xf32>
    %cst = arith.constant dense<0.000000e+00> : vector<8x128xf32>
    %3 = tpu.matmul %0, %2, %cst {dimension_numbers = #tpu.dot_dimension_numbers<[1], [0], [0], [1], [0, 0, 1, 1], [], []>} : vector<8x256xf32>, vector<256x128xf32>, vector<8x128xf32> -> vector<8x128xf32>
    %cst_5 = arith.constant dense<0.000000e+00> : vector<8x128xf32>
    %4 = tpu.matmul %1, %2, %cst_5 {dimension_numbers = #tpu.dot_dimension_numbers<[1], [0], [0], [1], [0, 0, 1, 1], [], []>} : vector<8x256xf32>, vector<256x128xf32>, vector<8x128xf32> -> vector<8x128xf32>
    %cst_6 = arith.constant 1.000000e+00 : f32
    %5 = vector.broadcast %cst_6 : f32 to vector<8x128xf32>
    %6 = arith.addf %4, %5 : vector<8x128xf32>
    %7 = arith.divf %3, %6 : vector<8x128xf32>
    %c0_7 = arith.constant 0 : index
    %c0_8 = arith.constant 0 : index
    %8 = vector.load %arg4[%c0_7, %c0_8] : memref<128x128xf32, #tpu.memory_space<vmem>>, vector<128x128xf32>
    %cst_9 = arith.constant dense<0.000000e+00> : vector<8x128xf32>
    %9 = tpu.matmul %7, %8, %cst_9 {dimension_numbers = #tpu.dot_dimension_numbers<[1], [0], [0], [1], [0, 0, 1, 1], [], []>} : vector<8x128xf32>, vector<128x128xf32>, vector<8x128xf32> -> vector<8x128xf32>
    %10 = arith.subf %7, %9 : vector<8x128xf32>
    %11 = arith.mulf %10, %10 : vector<8x128xf32>
    %cst_10 = arith.constant dense<0.000000e+00> : vector<8x128xf32>
    %12 = tpu.matmul %11, %8, %cst_10 {dimension_numbers = #tpu.dot_dimension_numbers<[1], [0], [0], [1], [0, 0, 1, 1], [], []>} : vector<8x128xf32>, vector<128x128xf32>, vector<8x128xf32> -> vector<8x128xf32>
    %cst_11 = arith.constant 9.99999974E-6 : f32
    %13 = vector.broadcast %cst_11 : f32 to vector<8x128xf32>
    %14 = arith.addf %12, %13 : vector<8x128xf32>
    %15 = math.rsqrt %14 : vector<8x128xf32>
    %16 = arith.mulf %10, %15 : vector<8x128xf32>
    %c0_12 = arith.constant 0 : index
    %c0_13 = arith.constant 0 : index
    %17 = vector.load %arg5[%c0_12, %c0_13] : memref<1x128xf32, #tpu.memory_space<vmem>>, vector<1x128xf32>
    %18 = vector.broadcast %17 : vector<1x128xf32> to vector<8x128xf32>
    %19 = arith.mulf %16, %18 : vector<8x128xf32>
    %c0_14 = arith.constant 0 : index
    %c0_15 = arith.constant 0 : index
    %20 = vector.load %arg6[%c0_14, %c0_15] : memref<1x128xf32, #tpu.memory_space<vmem>>, vector<1x128xf32>
    %21 = vector.broadcast %20 : vector<1x128xf32> to vector<8x128xf32>
    %22 = arith.addf %19, %21 : vector<8x128xf32>
    %c0_16 = arith.constant 0 : index
    %c0_17 = arith.constant 0 : index
    %23 = vector.load %arg7[%c0_16, %c0_17] : memref<8x128xf32, #tpu.memory_space<vmem>>, vector<8x128xf32>
    tpu.vector_store %arg7[%c0_16, %c0_17], %22 {strides = array<i32>} : memref<8x128xf32, #tpu.memory_space<vmem>>, vector<8x128xf32>,
    return
  }
  func.func @transform_0(%arg0: i32) -> (i32, i32) {
    %c0_i32 = arith.constant 0 : i32
    %c0_i32_0 = arith.constant 0 : i32
    return %arg0, %c0_i32 : i32, i32
  }
  func.func @transform_1(%arg0: i32) -> (i32, i32) {
    %c0_i32 = arith.constant 0 : i32
    %c0_i32_0 = arith.constant 0 : i32
    return %arg0, %c0_i32 : i32, i32
  }
  func.func @transform_2(%arg0: i32) -> (i32, i32) {
    %c0_i32 = arith.constant 0 : i32
    %c0_i32_0 = arith.constant 0 : i32
    %c0_i32_1 = arith.constant 0 : i32
    return %c0_i32, %c0_i32_0 : i32, i32
  }
  func.func @transform_3(%arg0: i32) -> (i32, i32) {
    %c0_i32 = arith.constant 0 : i32
    %c0_i32_0 = arith.constant 0 : i32
    %c0_i32_1 = arith.constant 0 : i32
    return %c0_i32, %c0_i32_0 : i32, i32
  }
  func.func @transform_4(%arg0: i32) -> (i32, i32) {
    %c0_i32 = arith.constant 0 : i32
    %c0_i32_0 = arith.constant 0 : i32
    %c0_i32_1 = arith.constant 0 : i32
    return %c0_i32, %c0_i32_0 : i32, i32
  }
  func.func @transform_5(%arg0: i32) -> (i32, i32) {
    %c0_i32 = arith.constant 0 : i32
    %c0_i32_0 = arith.constant 0 : i32
    %c0_i32_1 = arith.constant 0 : i32
    return %c0_i32, %c0_i32_0 : i32, i32
  }
  func.func @transform_6(%arg0: i32) -> (i32, i32) {
    %c0_i32 = arith.constant 0 : i32
    %c0_i32_0 = arith.constant 0 : i32
    return %arg0, %c0_i32 : i32, i32
  }
}

</mosaic_0001>

<llo_original>
// kernel: tpu_custom_call.1
$region0: #{tpu_custom_call.1}
  #allocation0 [shape = 'u32[]', space=smem, size = 0x4, offset = 0x4, fixed_abs, tag = 'smem constant byte address 0x4 - core index']
  #allocation1 [shape = 'u32[144,128]{1,0:T(1,128)}', space=vmem, size = 0x12000, scoped, tag = 'internal scratch']
  %s0 = inlined_call_operand.hbm [shape: f32[8,256], index: 0, kind: input, shape index: {}]
  %s1 = inlined_call_operand.hbm [shape: f32[8,256], index: 1, kind: input, shape index: {}]
  %s2 = inlined_call_operand.hbm [shape: f32[256,128], index: 2, kind: input, shape index: {}]
  %s3 = inlined_call_operand.hbm [shape: f32[128,128], index: 3, kind: input, shape index: {}]
  %s4 = inlined_call_operand.vmem [shape: f32[1,128], index: 4, kind: input, shape index: {}]
  %s5 = inlined_call_operand.vmem [shape: f32[1,128], index: 5, kind: input, shape index: {}]
  %s6 = inlined_call_operand.hbm [shape: f32[8,128], index: 6, kind: output, shape index: {}]
  %s7 = sld [smem:[#allocation0]]
  $region50: #{tpu_custom_call.1} parent=0
    _
  %s9 = ssub.s32 1, %s7
  %s10 = scalar_select 0, %s9, %s7
  $region1: #{tpu_custom_call.1} parent=0
    #allocation2 [shape = 'u8[8192]{0}', space=vmem, size = 0x2000, scoped, tag = 'input window, operand 0, single buffered']
    #allocation3 [shape = 's32[1]{0}', space=sflag, size = 0x4, scoped, tag = 'scoped memory for tpu_custom_call.1']
    #allocation4 [shape = 's32[1]{0}', space=sflag, size = 0x4, scoped, tag = 'scoped memory for tpu_custom_call.1']
    #allocation5 [shape = 'u8[8192]{0}', space=vmem, size = 0x2000, scoped, tag = 'input window, operand 1, single buffered']
    #allocation6 [shape = 's32[1]{0}', space=sflag, size = 0x4, scoped, tag = 'scoped memory for tpu_custom_call.1']
    #allocation7 [shape = 'u8[131072]{0}', space=vmem, size = 0x20000, scoped, tag = 'input window, operand 2, single buffered']
    #allocation8 [shape = 'u8[65536]{0}', space=vmem, size = 0x10000, scoped, tag = 'input window, operand 3, single buffered']
    #allocation9 [shape = 's32[1]{0}', space=sflag, size = 0x4, scoped, tag = 'scoped memory for tpu_custom_call.1']
    #allocation10 [shape = 'u8[4096]{0}', space=vmem, size = 0x1000, scoped, tag = 'output window, operand 0, single buffered']
    %11 = vsyncpa [#allocation3], 0
    %12 = vsyncpa [#allocation6], 0
    %13 = vsyncpa [#allocation9], 0
    %14 = vsyncpa [#allocation4], 0
    // Predicated region
    $region2: #{tpu_custom_call.1} parent=1 // pred_check
      _
    $region3: #{tpu_custom_call.1} parent=1 // pred_check_branch
      %16 = sbr.rel (0) target = $region5
    $region4: #{tpu_custom_call.1} parent=1 // pred_region
      %s18 = ssub.s32 256, 256
      %19 = vsyncadd [#allocation3], %s18
      %s21 = sshll.u32 [#allocation2], 4
      %s22 = int_to_ptr.vmem [resolvable:$true] %s21
      %24 = dma.hbm_to_vmem [thread:$0]  %s0, 256, %s22, [#allocation3]
    $region5: #{tpu_custom_call.1} parent=1 // pred_fallthru
      _
    // Predicated region
    $region6: #{tpu_custom_call.1} parent=1 // pred_check
      _
    $region7: #{tpu_custom_call.1} parent=1 // pred_check_branch
      %26 = sbr.rel (0) target = $region9
    $region8: #{tpu_custom_call.1} parent=1 // pred_region
      %s28 = ssub.s32 256, 256
      %29 = vsyncadd [#allocation6], %s28
      %s31 = sshll.u32 [#allocation5], 4
      %s32 = int_to_ptr.vmem [resolvable:$true] %s31
      %34 = dma.hbm_to_vmem [thread:$0]  %s1, 256, %s32, [#allocation6]
    $region9: #{tpu_custom_call.1} parent=1 // pred_fallthru
      _
    // Predicated region
    $region10: #{tpu_custom_call.1} parent=1 // pred_check
      _
    $region11: #{tpu_custom_call.1} parent=1 // pred_check_branch
      %36 = sbr.rel (0) target = $region13
    $region12: #{tpu_custom_call.1} parent=1 // pred_region
      %s38 = ssub.s32 4096, 4096
      %39 = vsyncadd [#allocation6], %s38
      %s40 = sshll.u32 [#allocation7], 4
      %s41 = int_to_ptr.vmem [resolvable:$true] %s40
      %46 = dma.hbm_to_vmem [thread:$0]  %s2, 4096, %s41, [#allocation6], 128, 128, 8
    $region13: #{tpu_custom_call.1} parent=1 // pred_fallthru
      _
    // Predicated region
    $region14: #{tpu_custom_call.1} parent=1 // pred_check
      _
    $region15: #{tpu_custom_call.1} parent=1 // pred_check_branch
      %48 = sbr.rel (0) target = $region17
    $region16: #{tpu_custom_call.1} parent=1 // pred_region
      %s50 = ssub.s32 2048, 2048
      %51 = vsyncadd [#allocation9], %s50
      %s52 = sshll.u32 [#allocation8], 4
      %s53 = int_to_ptr.vmem [resolvable:$true] %s52
      %58 = dma.hbm_to_vmem [thread:$0]  %s3, 2048, %s53, [#allocation9], 128, 128, 8
    $region17: #{tpu_custom_call.1} parent=1 // pred_fallthru
      _
    // Predicated region
    $region18: #{tpu_custom_call.1} parent=1 // pred_check
      _
    $region19: #{tpu_custom_call.1} parent=1 // pred_check_branch
      %60 = sbr.rel (0) target = $region21
    $region20: #{tpu_custom_call.1} parent=1 // pred_region
      _
    $region21: #{tpu_custom_call.1} parent=1 // pred_fallthru
      _
    // Predicated region
    $region22: #{tpu_custom_call.1} parent=1 // pred_check
      _
    $region23: #{tpu_custom_call.1} parent=1 // pred_check_branch
      %62 = sbr.rel (0) target = $region25
    $region24: #{tpu_custom_call.1} parent=1 // pred_region
      _
    $region25: #{tpu_custom_call.1} parent=1 // pred_fallthru
      _
    // Predicated region
    $region26: #{tpu_custom_call.1} parent=1 // pred_check
      _
    $region27: #{tpu_custom_call.1} parent=1 // pred_check_branch
      %64 = sbr.rel (0) target = $region29
    $region28: #{tpu_custom_call.1} parent=1 // pred_region
      %65 = dma.done [#allocation3], 256
    $region29: #{tpu_custom_call.1} parent=1 // pred_fallthru
      _
    // Predicated region
    $region30: #{tpu_custom_call.1} parent=1 // pred_check
      _
    $region31: #{tpu_custom_call.1} parent=1 // pred_check_branch
      %67 = sbr.rel (0) target = $region33
    $region32: #{tpu_custom_call.1} parent=1 // pred_region
      %68 = dma.done [#allocation6], 256
    $region33: #{tpu_custom_call.1} parent=1 // pred_fallthru
      _
    // Predicated region
    $region34: #{tpu_custom_call.1} parent=1 // pred_check
      _
    $region35: #{tpu_custom_call.1} parent=1 // pred_check_branch
      %70 = sbr.rel (0) target = $region37
    $region36: #{tpu_custom_call.1} parent=1 // pred_region
      %71 = dma.done [#allocation6], 4096
    $region37: #{tpu_custom_call.1} parent=1 // pred_fallthru
      _
    // Predicated region
    $region38: #{tpu_custom_call.1} parent=1 // pred_check
      _
    $region39: #{tpu_custom_call.1} parent=1 // pred_check_branch
      %73 = sbr.rel (0) target = $region41
    $region40: #{tpu_custom_call.1} parent=1 // pred_region
      %74 = dma.done [#allocation9], 2048
    $region41: #{tpu_custom_call.1} parent=1 // pred_fallthru
      _
    %v75 = vld [vmem:[#allocation2] sm:$0xff]
    %v76 = vld [vmem:[#allocation2 + $0x8] sm:$0xff]
    %v77 = vld [vmem:[#allocation5] sm:$0xff]
    %v78 = vld [vmem:[#allocation5 + $0x8] sm:$0xff]
    %v79 = vld [vmem:[#allocation7] sm:$0xff]
    %v80 = vld [vmem:[#allocation7 + $0x8] sm:$0xff]
    %v81 = vld [vmem:[#allocation7 + $0x10] sm:$0xff]
    %v82 = vld [vmem:[#allocation7 + $0x18] sm:$0xff]
    %v83 = vld [vmem:[#allocation7 + $0x20] sm:$0xff]
    %v84 = vld [vmem:[#allocation7 + $0x28] sm:$0xff]
    %v85 = vld [vmem:[#allocation7 + $0x30] sm:$0xff]
    %v86 = vld [vmem:[#allocation7 + $0x38] sm:$0xff]
    %v87 = vld [vmem:[#allocation7 + $0x40] sm:$0xff]
    %v88 = vld [vmem:[#allocation7 + $0x48] sm:$0xff]
    %v89 = vld [vmem:[#allocation7 + $0x50] sm:$0xff]
    %v90 = vld [vmem:[#allocation7 + $0x58] sm:$0xff]
    %v91 = vld [vmem:[#allocation7 + $0x60] sm:$0xff]
    %v92 = vld [vmem:[#allocation7 + $0x68] sm:$0xff]
    %v93 = vld [vmem:[#allocation7 + $0x70] sm:$0xff]
    %v94 = vld [vmem:[#allocation7 + $0x78] sm:$0xff]
    %v95 = vld [vmem:[#allocation7 + $0x80] sm:$0xff]
    %v96 = vld [vmem:[#allocation7 + $0x88] sm:$0xff]
    %v97 = vld [vmem:[#allocation7 + $0x90] sm:$0xff]
    %v98 = vld [vmem:[#allocation7 + $0x98] sm:$0xff]
    %v99 = vld [vmem:[#allocation7 + $0xa0] sm:$0xff]
    %v100 = vld [vmem:[#allocation7 + $0xa8] sm:$0xff]
    %v101 = vld [vmem:[#allocation7 + $0xb0] sm:$0xff]
    %v102 = vld [vmem:[#allocation7 + $0xb8] sm:$0xff]
    %v103 = vld [vmem:[#allocation7 + $0xc0] sm:$0xff]
    %v104 = vld [vmem:[#allocation7 + $0xc8] sm:$0xff]
    %v105 = vld [vmem:[#allocation7 + $0xd0] sm:$0xff]
    %v106 = vld [vmem:[#allocation7 + $0xd8] sm:$0xff]
    %v107 = vld [vmem:[#allocation7 + $0xe0] sm:$0xff]
    %v108 = vld [vmem:[#allocation7 + $0xe8] sm:$0xff]
    %v109 = vld [vmem:[#allocation7 + $0xf0] sm:$0xff]
    %v110 = vld [vmem:[#allocation7 + $0xf8] sm:$0xff]
    %111 = vmatprep.subr.mxu0 0.0
    %112 = vmatpush1.msra.mxu0 %v94
    %113 = vmatprep.subr.mxu0 0.0
    %114 = vmatpush1.msra.mxu0 %v93
    %115 = vmatprep.subr.mxu0 0.0
    %116 = vmatpush1.msra.mxu0 %v92
    %117 = vmatprep.subr.mxu0 0.0
    %118 = vmatpush1.msra.mxu0 %v91
    %119 = vmatprep.subr.mxu0 0.0
    %120 = vmatpush1.msra.mxu0 %v90
    %121 = vmatprep.subr.mxu0 0.0
    %122 = vmatpush1.msra.mxu0 %v89
    %123 = vmatprep.subr.mxu0 0.0
    %124 = vmatpush1.msra.mxu0 %v88
    %125 = vmatprep.subr.mxu0 0.0
    %126 = vmatpush1.msra.mxu0 %v87
    %127 = vmatprep.subr.mxu0 0.0
    %128 = vmatpush1.msra.mxu0 %v86
    %129 = vmatprep.subr.mxu0 0.0
    %130 = vmatpush1.msra.mxu0 %v85
    %131 = vmatprep.subr.mxu0 0.0
    %132 = vmatpush1.msra.mxu0 %v84
    %133 = vmatprep.subr.mxu0 0.0
    %134 = vmatpush1.msra.mxu0 %v83
    %135 = vmatprep.subr.mxu0 0.0
    %136 = vmatpush1.msra.mxu0 %v82
    %137 = vmatprep.subr.mxu0 0.0
    %138 = vmatpush1.msra.mxu0 %v81
    %139 = vmatprep.subr.mxu0 0.0
    %140 = vmatpush1.msra.mxu0 %v80
    %141 = vmatprep.subr.mxu0 0.0
    %142 = vmatpush1.msra.mxu0 %v79
    %143 = vmatprep.subr.mxu0 0.0
    %144 = vmatpush2.msra.mxu0 %v110
    %145 = vmatprep.subr.mxu0 0.0
    %146 = vmatpush2.msra.mxu0 %v109
    %147 = vmatprep.subr.mxu0 0.0
    %148 = vmatpush2.msra.mxu0 %v108
    %149 = vmatprep.subr.mxu0 0.0
    %150 = vmatpush2.msra.mxu0 %v107
    %151 = vmatprep.subr.mxu0 0.0
    %152 = vmatpush2.msra.mxu0 %v106
    %153 = vmatprep.subr.mxu0 0.0
    %154 = vmatpush2.msra.mxu0 %v105
    %155 = vmatprep.subr.mxu0 0.0
    %156 = vmatpush2.msra.mxu0 %v104
    %157 = vmatprep.subr.mxu0 0.0
    %158 = vmatpush2.msra.mxu0 %v103
    %159 = vmatprep.subr.mxu0 0.0
    %160 = vmatpush2.msra.mxu0 %v102
    %161 = vmatprep.subr.mxu0 0.0
    %162 = vmatpush2.msra.mxu0 %v101
    %163 = vmatprep.subr.mxu0 0.0
    %164 = vmatpush2.msra.mxu0 %v100
    %165 = vmatprep.subr.mxu0 0.0
    %166 = vmatpush2.msra.mxu0 %v99
    %167 = vmatprep.subr.mxu0 0.0
    %168 = vmatpush2.msra.mxu0 %v98
    %169 = vmatprep.subr.mxu0 0.0
    %170 = vmatpush2.msra.mxu0 %v97
    %171 = vmatprep.subr.mxu0 0.0
    %172 = vmatpush2.msra.mxu0 %v96
    %173 = vmatprep.subr.mxu0 0.0
    %174 = vmatpush2.msra.mxu0 %v95
    %175 = vmatprep.mubr.f32.mxu0 %v76
    %176 = vmatmul.mubr.f32.gmra.mxu0 %v75
    %v177 = vpop.f32.mrf.mxu0
    %v178 = vadd.f32 0.0, %v177
    %v179 = vpop.f32.mrf.mxu0
    %180 = vdwg.mxu0
    %181 = vmatprep.subr.mxu0 0.0
    %182 = vmatpush1.msra.mxu0 %v94
    %183 = vmatprep.subr.mxu0 0.0
    %184 = vmatpush1.msra.mxu0 %v93
    %185 = vmatprep.subr.mxu0 0.0
    %186 = vmatpush1.msra.mxu0 %v92
    %187 = vmatprep.subr.mxu0 0.0
    %188 = vmatpush1.msra.mxu0 %v91
    %189 = vmatprep.subr.mxu0 0.0
    %190 = vmatpush1.msra.mxu0 %v90
    %191 = vmatprep.subr.mxu0 0.0
    %192 = vmatpush1.msra.mxu0 %v89
    %193 = vmatprep.subr.mxu0 0.0
    %194 = vmatpush1.msra.mxu0 %v88
    %195 = vmatprep.subr.mxu0 0.0
    %196 = vmatpush1.msra.mxu0 %v87
    %197 = vmatprep.subr.mxu0 0.0
    %198 = vmatpush1.msra.mxu0 %v86
    %199 = vmatprep.subr.mxu0 0.0
    %200 = vmatpush1.msra.mxu0 %v85
    %201 = vmatprep.subr.mxu0 0.0
    %202 = vmatpush1.msra.mxu0 %v84
    %203 = vmatprep.subr.mxu0 0.0
    %204 = vmatpush1.msra.mxu0 %v83
    %205 = vmatprep.subr.mxu0 0.0
    %206 = vmatpush1.msra.mxu0 %v82
    %207 = vmatprep.subr.mxu0 0.0
    %208 = vmatpush1.msra.mxu0 %v81
    %209 = vmatprep.subr.mxu0 0.0
    %210 = vmatpush1.msra.mxu0 %v80
    %211 = vmatprep.subr.mxu0 0.0
    %212 = vmatpush1.msra.mxu0 %v79
    %213 = vmatprep.subr.mxu0 0.0
    %214 = vmatpush2.msra.mxu0 %v110
    %215 = vmatprep.subr.mxu0 0.0
    %216 = vmatpush2.msra.mxu0 %v109
    %217 = vmatprep.subr.mxu0 0.0
    %218 = vmatpush2.msra.mxu0 %v108
    %219 = vmatprep.subr.mxu0 0.0
    %220 = vmatpush2.msra.mxu0 %v107
    %221 = vmatprep.subr.mxu0 0.0
    %222 = vmatpush2.msra.mxu0 %v106
    %223 = vmatprep.subr.mxu0 0.0
    %224 = vmatpush2.msra.mxu0 %v105
    %225 = vmatprep.subr.mxu0 0.0
    %226 = vmatpush2.msra.mxu0 %v104
    %227 = vmatprep.subr.mxu0 0.0
    %228 = vmatpush2.msra.mxu0 %v103
    %229 = vmatprep.subr.mxu0 0.0
    %230 = vmatpush2.msra.mxu0 %v102
    %231 = vmatprep.subr.mxu0 0.0
    %232 = vmatpush2.msra.mxu0 %v101
    %233 = vmatprep.subr.mxu0 0.0
    %234 = vmatpush2.msra.mxu0 %v100
    %235 = vmatprep.subr.mxu0 0.0
    %236 = vmatpush2.msra.mxu0 %v99
    %237 = vmatprep.subr.mxu0 0.0
    %238 = vmatpush2.msra.mxu0 %v98
    %239 = vmatprep.subr.mxu0 0.0
    %240 = vmatpush2.msra.mxu0 %v97
    %241 = vmatprep.subr.mxu0 0.0
    %242 = vmatpush2.msra.mxu0 %v96
    %243 = vmatprep.subr.mxu0 0.0
    %244 = vmatpush2.msra.mxu0 %v95
    %245 = vmatprep.mubr.f32.mxu0 %v78
    %246 = vmatmul.mubr.f32.gmra.mxu0 %v77
    %v247 = vpop.f32.mrf.mxu0
    %v248 = vadd.f32 1.0, %v247
    %v249 = vpop.f32.mrf.mxu0
    %250 = vdwg.mxu0
    %v251 = vrcp.pop %v248
    %v252 = vmul.f32 %v178, %v251
    %v253 = vld [vmem:[#allocation8] sm:$0xff]
    %v254 = vld [vmem:[#allocation8 + $0x8] sm:$0xff]
    %v255 = vld [vmem:[#allocation8 + $0x10] sm:$0xff]
    %v256 = vld [vmem:[#allocation8 + $0x18] sm:$0xff]
    %v257 = vld [vmem:[#allocation8 + $0x20] sm:$0xff]
    %v258 = vld [vmem:[#allocation8 + $0x28] sm:$0xff]
    %v259 = vld [vmem:[#allocation8 + $0x30] sm:$0xff]
    %v260 = vld [vmem:[#allocation8 + $0x38] sm:$0xff]
    %v261 = vld [vmem:[#allocation8 + $0x40] sm:$0xff]
    %v262 = vld [vmem:[#allocation8 + $0x48] sm:$0xff]
    %v263 = vld [vmem:[#allocation8 + $0x50] sm:$0xff]
    %v264 = vld [vmem:[#allocation8 + $0x58] sm:$0xff]
    %v265 = vld [vmem:[#allocation8 + $0x60] sm:$0xff]
    %v266 = vld [vmem:[#allocation8 + $0x68] sm:$0xff]
    %v267 = vld [vmem:[#allocation8 + $0x70] sm:$0xff]
    %v268 = vld [vmem:[#allocation8 + $0x78] sm:$0xff]
    %269 = vmatprep.subr.mxu0 0.0
    %270 = vmatpush1.msra.mxu0 %v268
    %271 = vmatprep.subr.mxu0 0.0
    %272 = vmatpush1.msra.mxu0 %v267
    %273 = vmatprep.subr.mxu0 0.0
    %274 = vmatpush1.msra.mxu0 %v266
    %275 = vmatprep.subr.mxu0 0.0
    %276 = vmatpush1.msra.mxu0 %v265
    %277 = vmatprep.subr.mxu0 0.0
    %278 = vmatpush1.msra.mxu0 %v264
    %279 = vmatprep.subr.mxu0 0.0
    %280 = vmatpush1.msra.mxu0 %v263
    %281 = vmatprep.subr.mxu0 0.0
    %282 = vmatpush1.msra.mxu0 %v262
    %283 = vmatprep.subr.mxu0 0.0
    %284 = vmatpush1.msra.mxu0 %v261
    %285 = vmatprep.subr.mxu0 0.0
    %286 = vmatpush1.msra.mxu0 %v260
    %287 = vmatprep.subr.mxu0 0.0
    %288 = vmatpush1.msra.mxu0 %v259
    %289 = vmatprep.subr.mxu0 0.0
    %290 = vmatpush1.msra.mxu0 %v258
    %291 = vmatprep.subr.mxu0 0.0
    %292 = vmatpush1.msra.mxu0 %v257
    %293 = vmatprep.subr.mxu0 0.0
    %294 = vmatpush1.msra.mxu0 %v256
    %295 = vmatprep.subr.mxu0 0.0
    %296 = vmatpush1.msra.mxu0 %v255
    %297 = vmatprep.subr.mxu0 0.0
    %298 = vmatpush1.msra.mxu0 %v254
    %299 = vmatprep.subr.mxu0 0.0
    %300 = vmatpush1.msra.mxu0 %v253
    %301 = vmatprep.subr.mxu0 0.0
    %302 = vmatpush2.msra.mxu0 0.0
    %303 = vmatprep.subr.mxu0 0.0
    %304 = vmatpush2.msra.mxu0 0.0
    %305 = vmatprep.subr.mxu0 0.0
    %306 = vmatpush2.msra.mxu0 0.0
    %307 = vmatprep.subr.mxu0 0.0
    %308 = vmatpush2.msra.mxu0 0.0
    %309 = vmatprep.subr.mxu0 0.0
    %310 = vmatpush2.msra.mxu0 0.0
    %311 = vmatprep.subr.mxu0 0.0
    %312 = vmatpush2.msra.mxu0 0.0
    %313 = vmatprep.subr.mxu0 0.0
    %314 = vmatpush2.msra.mxu0 0.0
    %315 = vmatprep.subr.mxu0 0.0
    %316 = vmatpush2.msra.mxu0 0.0
    %317 = vmatprep.subr.mxu0 0.0
    %318 = vmatpush2.msra.mxu0 0.0
    %319 = vmatprep.subr.mxu0 0.0
    %320 = vmatpush2.msra.mxu0 0.0
    %321 = vmatprep.subr.mxu0 0.0
    %322 = vmatpush2.msra.mxu0 0.0
    %323 = vmatprep.subr.mxu0 0.0
    %324 = vmatpush2.msra.mxu0 0.0
    %325 = vmatprep.subr.mxu0 0.0
    %326 = vmatpush2.msra.mxu0 0.0
    %327 = vmatprep.subr.mxu0 0.0
    %328 = vmatpush2.msra.mxu0 0.0
    %329 = vmatprep.subr.mxu0 0.0
    %330 = vmatpush2.msra.mxu0 0.0
    %331 = vmatprep.subr.mxu0 0.0
    %332 = vmatpush2.msra.mxu0 0.0
    %333 = vmatprep.mubr.f32.mxu0 0.0
    %334 = vmatmul.mubr.f32.gmra.mxu0 %v252
    %v335 = vpop.f32.mrf.mxu0
    %v336 = vadd.f32 0.0, %v335
    %v337 = vpop.f32.mrf.mxu0
    %338 = vdwg.mxu0
    %v339 = vsub.f32 %v252, %v336
    %v340 = vmul.f32 %v339, %v339
    %341 = vmatprep.subr.mxu0 0.0
    %342 = vmatpush1.msra.mxu0 %v268
    %343 = vmatprep.subr.mxu0 0.0
    %344 = vmatpush1.msra.mxu0 %v267
    %345 = vmatprep.subr.mxu0 0.0
    %346 = vmatpush1.msra.mxu0 %v266
    %347 = vmatprep.subr.mxu0 0.0
    %348 = vmatpush1.msra.mxu0 %v265
    %349 = vmatprep.subr.mxu0 0.0
    %350 = vmatpush1.msra.mxu0 %v264
    %351 = vmatprep.subr.mxu0 0.0
    %352 = vmatpush1.msra.mxu0 %v263
    %353 = vmatprep.subr.mxu0 0.0
    %354 = vmatpush1.msra.mxu0 %v262
    %355 = vmatprep.subr.mxu0 0.0
    %356 = vmatpush1.msra.mxu0 %v261
    %357 = vmatprep.subr.mxu0 0.0
    %358 = vmatpush1.msra.mxu0 %v260
    %359 = vmatprep.subr.mxu0 0.0
    %360 = vmatpush1.msra.mxu0 %v259
    %361 = vmatprep.subr.mxu0 0.0
    %362 = vmatpush1.msra.mxu0 %v258
    %363 = vmatprep.subr.mxu0 0.0
    %364 = vmatpush1.msra.mxu0 %v257
    %365 = vmatprep.subr.mxu0 0.0
    %366 = vmatpush1.msra.mxu0 %v256
    %367 = vmatprep.subr.mxu0 0.0
    %368 = vmatpush1.msra.mxu0 %v255
    %369 = vmatprep.subr.mxu0 0.0
    %370 = vmatpush1.msra.mxu0 %v254
    %371 = vmatprep.subr.mxu0 0.0
    %372 = vmatpush1.msra.mxu0 %v253
    %373 = vmatprep.subr.mxu0 0.0
    %374 = vmatpush2.msra.mxu0 0.0
    %375 = vmatprep.subr.mxu0 0.0
    %376 = vmatpush2.msra.mxu0 0.0
    %377 = vmatprep.subr.mxu0 0.0
    %378 = vmatpush2.msra.mxu0 0.0
    %379 = vmatprep.subr.mxu0 0.0
    %380 = vmatpush2.msra.mxu0 0.0
    %381 = vmatprep.subr.mxu0 0.0
    %382 = vmatpush2.msra.mxu0 0.0
    %383 = vmatprep.subr.mxu0 0.0
    %384 = vmatpush2.msra.mxu0 0.0
    %385 = vmatprep.subr.mxu0 0.0
    %386 = vmatpush2.msra.mxu0 0.0
    %387 = vmatprep.subr.mxu0 0.0
    %388 = vmatpush2.msra.mxu0 0.0
    %389 = vmatprep.subr.mxu0 0.0
    %390 = vmatpush2.msra.mxu0 0.0
    %391 = vmatprep.subr.mxu0 0.0
    %392 = vmatpush2.msra.mxu0 0.0
    %393 = vmatprep.subr.mxu0 0.0
    %394 = vmatpush2.msra.mxu0 0.0
    %395 = vmatprep.subr.mxu0 0.0
    %396 = vmatpush2.msra.mxu0 0.0
    %397 = vmatprep.subr.mxu0 0.0
    %398 = vmatpush2.msra.mxu0 0.0
    %399 = vmatprep.subr.mxu0 0.0
    %400 = vmatpush2.msra.mxu0 0.0
    %401 = vmatprep.subr.mxu0 0.0
    %402 = vmatpush2.msra.mxu0 0.0
    %403 = vmatprep.subr.mxu0 0.0
    %404 = vmatpush2.msra.mxu0 0.0
    %405 = vmatprep.mubr.f32.mxu0 0.0
    %406 = vmatmul.mubr.f32.gmra.mxu0 %v340
    %v407 = vpop.f32.mrf.mxu0
    %v408 = vadd.f32 1e-05, %v407
    %v409 = vpop.f32.mrf.mxu0
    %410 = vdwg.mxu0
    %v411 = vrsqrt.pop %v408
    %v412 = vmul.f32 %v339, %v411
    %v413 = vld [vmem:[%s4] sm:$0x1]
    %v415 = vlaneseq
    %v416 = vshrl.u32 %v415, 7
    %v417 = vsub.s32 0, %v416
    %v418 = vrot.slane %v413, %v417
    %v420 = vmul.f32 %v412, %v418
    %v421 = vld [vmem:[%s5] sm:$0x1]
    %v423 = vlaneseq
    %v424 = vshrl.u32 %v423, 7
    %v425 = vsub.s32 0, %v424
    %v426 = vrot.slane %v421, %v425
    %v428 = vadd.f32 %v420, %v426
    %429 = vst [vmem:[#allocation10] sm:$0xff] %v428
    // Predicated region
    $region42: #{tpu_custom_call.1} parent=1 // pred_check
      _
    $region43: #{tpu_custom_call.1} parent=1 // pred_check_branch
      %431 = sbr.rel (0) target = $region45
    $region44: #{tpu_custom_call.1} parent=1 // pred_region
      %s433 = ssub.s32 128, 128
      %434 = vsyncadd [#allocation4], %s433
      %s436 = sshll.u32 [#allocation10], 4
      %s437 = int_to_ptr.vmem [resolvable:$true] %s436
      %439 = dma.vmem_to_hbm [thread:$0]  %s437, 128, %s6, [#allocation4]
    $region45: #{tpu_custom_call.1} parent=1 // pred_fallthru
      _
    // Predicated region
    $region46: #{tpu_custom_call.1} parent=1 // pred_check
      _
    $region47: #{tpu_custom_call.1} parent=1 // pred_check_branch
      %441 = sbr.rel (0) target = $region49
    $region48: #{tpu_custom_call.1} parent=1 // pred_region
      %442 = dma.done [#allocation4], 128
    $region49: #{tpu_custom_call.1} parent=1 // pred_fallthru
      _
    %443 = vsyncpa [#allocation3], 1
    %444 = vsyncpa [#allocation6], 1
    %445 = vsyncpa [#allocation9], 1
    %446 = vsyncpa [#allocation4], 1

</llo_original>
